<compile_context>
chip_gen: v7x
topology: tpu7x:2x2x1
jax: 0.10.0
libtpu: 0.0.40
codegen_flags: <defaults>
</compile_context>

<pallas_src>
import functools

import jax
import jax.numpy as jnp
from jax.experimental import pallas as pl
from jax.experimental.pallas import tpu as pltpu


def _round_up(x, m):
    return ((x + m - 1) // m) * m


def _pick_tk(K):
    """Reduction tile that divides K exactly (keeps the K axis garbage-free)."""
    for tk in (512, 256, 128):
        if K % tk == 0:
            return tk
    # small / odd K (first conv layers: 27, 48, 144, 288): one full-K block
    return K


def _pick_rows(m, cap):
    """Row tile: full dim when small (always legal), else a multiple-of-8 cap."""
    return m if m <= cap else cap


def _pick_tn(n, cap=256):
    if n % 128 == 0:
        return min(cap, n)
    if n < 128:
        return n            # block minor == full array dim (legal)
    return 128


# ---------------------------------------------------------------------------
# Pallas kernels
# ---------------------------------------------------------------------------
def _matmul_bias_act_kernel(a_ref, b_ref, bias_ref, o_ref, acc_ref, *, act):
    @pl.when(pl.program_id(2) == 0)
    def _():
        acc_ref[...] = jnp.zeros_like(acc_ref)

    acc_ref[...] += jnp.dot(a_ref[...], b_ref[...],
                            preferred_element_type=jnp.float32)

    @pl.when(pl.program_id(2) == pl.num_programs(2) - 1)
    def _():
        y = acc_ref[...] + bias_ref[...]
        if act == "leaky":
            y = jnp.where(y > 0, y, 0.2 * y)
        elif act == "relu":
            y = jnp.maximum(y, 0.0)
        o_ref[...] = y.astype(o_ref.dtype)


def _matvec_bias_kernel(a_ref, w_ref, bias_ref, o_ref, acc_ref):
    @pl.when(pl.program_id(1) == 0)
    def _():
        acc_ref[...] = jnp.zeros_like(acc_ref)

    a = a_ref[...].astype(jnp.float32)
    w = w_ref[...].astype(jnp.float32)          # (1, tk), broadcast over rows
    acc_ref[...] += jnp.sum(a * w, axis=1, keepdims=True)

    @pl.when(pl.program_id(1) == pl.num_programs(1) - 1)
    def _():
        o_ref[...] = (acc_ref[...] + bias_ref[...]).astype(o_ref.dtype)


def _absdiff_sum_kernel(a_ref, b_ref, o_ref):
    @pl.when(pl.program_id(0) == 0)
    def _():
        o_ref[...] = jnp.zeros_like(o_ref)
    o_ref[...] += jnp.sum(jnp.abs(a_ref[...] - b_ref[...]))


def _hinge_stats_kernel(lr_ref, lf_ref, hr_ref, hf_ref, sr_ref, sf_ref):
    @pl.when(pl.program_id(0) == 0)
    def _():
        hr_ref[...] = jnp.zeros_like(hr_ref)
        hf_ref[...] = jnp.zeros_like(hf_ref)
        sr_ref[...] = jnp.zeros_like(sr_ref)
        sf_ref[...] = jnp.zeros_like(sf_ref)
    lr = lr_ref[...]
    lf = lf_ref[...]
    hr_ref[...] += jnp.sum(jnp.maximum(1.0 - lr, 0.0))
    hf_ref[...] += jnp.sum(jnp.maximum(1.0 + lf, 0.0))
    sr_ref[...] += jnp.sum(lr)
    sf_ref[...] += jnp.sum(lf)


def _channel_stats_kernel(x_ref, s_ref, q_ref, *, rows, block_rows):
    i = pl.program_id(0)

    @pl.when(i == 0)
    def _():
        s_ref[...] = jnp.zeros_like(s_ref)
        q_ref[...] = jnp.zeros_like(q_ref)

    x = x_ref[...]
    if rows % block_rows != 0:   # mask garbage rows of the partial boundary block
        ridx = jax.lax.broadcasted_iota(jnp.int32, x.shape, 0) + i * block_rows
        x = jnp.where(ridx < rows, x, 0.0)
    s_ref[...] += jnp.sum(x, axis=0, keepdims=True)
    q_ref[...] += jnp.sum(x * x, axis=0, keepdims=True)


def _scale_shift_act_kernel(x_ref, sc_ref, sh_ref, o_ref, *, slope):
    y = x_ref[...] * sc_ref[...] + sh_ref[...]
    o_ref[...] = jnp.where(y > 0, y, slope * y)


def _lpips_stage_kernel(fx_ref, fy_ref, lin_ref, o_ref, *, rows, block_rows):
    i = pl.program_id(0)

    @pl.when(i == 0)
    def _():
        o_ref[...] = jnp.zeros_like(o_ref)

    fx = fx_ref[...]
    fy = fy_ref[...]
    # LPIPS-style unit-normalization over channels, then weighted squared diff.
    nx = fx / (jnp.sqrt(jnp.sum(fx * fx, axis=1, keepdims=True)) + 1e-10)
    ny = fy / (jnp.sqrt(jnp.sum(fy * fy, axis=1, keepdims=True)) + 1e-10)
    d = (nx - ny) ** 2 * lin_ref[...]
    if rows % block_rows != 0:
        ridx = jax.lax.broadcasted_iota(jnp.int32, d.shape, 0) + i * block_rows
        d = jnp.where(ridx < rows, d, 0.0)
    o_ref[...] += jnp.sum(d)


def _mean_var_kernel(x_ref, mean_ref, var_ref, *, n):
    x = x_ref[...]
    idx = (jax.lax.broadcasted_iota(jnp.int32, x.shape, 0) * 128
           + jax.lax.broadcasted_iota(jnp.int32, x.shape, 1))
    mask = idx < n
    xm = jnp.where(mask, x, 0.0)
    mu = jnp.sum(xm) / n
    d = jnp.where(mask, x - mu, 0.0)            # two-pass: no cancellation
    mean_ref[...] = jnp.reshape(mu, (1, 1))
    var_ref[...] = jnp.reshape(jnp.sum(d * d) / (n - 1), (1, 1))


# ---------------------------------------------------------------------------
# Pallas wrappers
# ---------------------------------------------------------------------------
def pallas_matmul_bias_act(a, b, bias, act="none", tm_cap=256, tn_cap=256):
    """(M,K) @ (K,N) + bias, optional fused LeakyReLU/ReLU. bf16 MXU, f32 acc."""
    M, K = a.shape
    Kb, N = b.shape
    assert K == Kb
    a = a.astype(jnp.bfloat16)
    b = b.astype(jnp.bfloat16)
    bias2 = jnp.reshape(bias, (1, N)).astype(jnp.float32)
    tk = _pick_tk(K)
    tm = _pick_rows(M, tm_cap)
    tn = _pick_tn(N, tn_cap)
    grid = (pl.cdiv(M, tm), pl.cdiv(N, tn), K // tk)
    return pl.pallas_call(
        functools.partial(_matmul_bias_act_kernel, act=act),
        out_shape=jax.ShapeDtypeStruct((M, N), jnp.float32),
        grid_spec=pltpu.PrefetchScalarGridSpec(
            num_scalar_prefetch=0,
            grid=grid,
            in_specs=[
                pl.BlockSpec((tm, tk), lambda i, j, k: (i, k)),
                pl.BlockSpec((tk, tn), lambda i, j, k: (k, j)),
                pl.BlockSpec((1, tn), lambda i, j, k: (0, j)),
            ],
            out_specs=pl.BlockSpec((tm, tn), lambda i, j, k: (i, j)),
            scratch_shapes=[pltpu.VMEM((tm, tn), jnp.float32)]),
        compiler_params=pltpu.CompilerParams(
            dimension_semantics=("parallel", "parallel", "arbitrary")),
    )(a, b, bias2)


def pallas_matvec_bias(a, w, bias, tm_cap=256):
    """(M,K) @ (K,1) + bias as a VPU lane-reduction (no N=128 MXU padding)."""
    M, K = a.shape
    a = a.astype(jnp.bfloat16)
    w2 = jnp.reshape(w, (1, K)).astype(jnp.bfloat16)
    bias2 = jnp.reshape(bias, (1, 1)).astype(jnp.float32)
    tk = _pick_tk(K)
    tm = _pick_rows(M, tm_cap)
    grid = (pl.cdiv(M, tm), K // tk)
    return pl.pallas_call(
        _matvec_bias_kernel,
        out_shape=jax.ShapeDtypeStruct((M, 1), jnp.float32),
        grid_spec=pltpu.PrefetchScalarGridSpec(
            num_scalar_prefetch=0,
            grid=grid,
            in_specs=[
                pl.BlockSpec((tm, tk), lambda i, k: (i, k)),
                pl.BlockSpec((1, tk), lambda i, k: (0, k)),
                pl.BlockSpec((1, 1), lambda i, k: (0, 0)),
            ],
            out_specs=pl.BlockSpec((tm, 1), lambda i, k: (i, 0)),
            scratch_shapes=[pltpu.VMEM((tm, 1), jnp.float32)]),
        compiler_params=pltpu.CompilerParams(
            dimension_semantics=("parallel", "arbitrary")),
    )(a, w2, bias2)


def _flat_slab(x, pad_value=0.0):
    """Flatten, zero/sentinel pad to an exact multiple of (block_rows, 128)."""
    flat = jnp.ravel(x).astype(jnp.float32)
    n = flat.shape[0]
    rows_raw = pl.cdiv(n, 128)
    block_rows = min(1024, _round_up(rows_raw, 8))
    rows_p = _round_up(rows_raw, block_rows)
    pad = rows_p * 128 - n
    flat = jnp.pad(flat, (0, pad), constant_values=pad_value)
    return flat.reshape(rows_p, 128), n, block_rows, pad


def pallas_absdiff_mean(a, b):
    a2, n, block_rows, _ = _flat_slab(a)
    b2, _, _, _ = _flat_slab(b)
    out = pl.pallas_call(
        _absdiff_sum_kernel,
        out_shape=jax.ShapeDtypeStruct((1, 1), jnp.float32),
        grid=(a2.shape[0] // block_rows,),
        in_specs=[pl.BlockSpec((block_rows, 128), lambda i: (i, 0))] * 2,
        out_specs=pl.BlockSpec((1, 1), lambda i: (0, 0)),
        compiler_params=pltpu.CompilerParams(dimension_semantics=("arbitrary",)),
    )(a2, b2)
    return out[0, 0] / n


def pallas_hinge_and_means(logits_real, logits_fake):
    """Fused: hinge D-loss + mean(logits_real) + mean(logits_fake) in one launch."""
    lr2, n, block_rows, pad = _flat_slab(logits_real, pad_value=1.0)   # relu(1-1)=0
    lf2, _, _, _ = _flat_slab(logits_fake, pad_value=-1.0)             # relu(1-1)=0
    outs = pl.pallas_call(
        _hinge_stats_kernel,
        out_shape=tuple(jax.ShapeDtypeStruct((1, 1), jnp.float32) for _ in range(4)),
        grid=(lr2.shape[0] // block_rows,),
        in_specs=[pl.BlockSpec((block_rows, 128), lambda i: (i, 0))] * 2,
        out_specs=tuple(pl.BlockSpec((1, 1), lambda i: (0, 0)) for _ in range(4)),
        compiler_params=pltpu.CompilerParams(dimension_semantics=("arbitrary",)),
    )(lr2, lf2)
    s_hr, s_hf, s_lr, s_lf = (o[0, 0] for o in outs)
    d_loss = 0.5 * (s_hr + s_hf) / n
    mean_real = (s_lr - pad * 1.0) / n           # undo sentinel padding
    mean_fake = (s_lf + pad * 1.0) / n
    return d_loss, mean_real, mean_fake


def pallas_mean_var(x):
    """mean and unbiased variance (torch .mean()/.var()) via a single-block kernel."""
    n = x.size
    flat = jnp.ravel(x).astype(jnp.float32)
    rows = _round_up(pl.cdiv(n, 128), 8)
    if rows * 128 * 4 > (8 << 20):
        # TODO(synk): very large coding_ratio would need a tiled two-pass kernel.
        return jnp.mean(flat[:n]), jnp.var(flat[:n], ddof=1)
    flat = jnp.pad(flat, (0, rows * 128 - n))
    x2 = flat.reshape(rows, 128)
    mean, var = pl.pallas_call(
        functools.partial(_mean_var_kernel, n=n),
        out_shape=(jax.ShapeDtypeStruct((1, 1), jnp.float32),) * 2,
        grid=(1,),
        in_specs=[pl.BlockSpec((rows, 128), lambda i: (0, 0))],
        out_specs=(pl.BlockSpec((1, 1), lambda i: (0, 0)),) * 2,
        compiler_params=pltpu.CompilerParams(dimension_semantics=("arbitrary",)),
    )(x2)
    return mean[0, 0], var[0, 0]


def pallas_channel_sum_sumsq(x2d):
    """Per-channel sum and sum-of-squares over rows of (M, C)."""
    M, C = x2d.shape
    block_rows = _pick_rows(M, 512)
    s, q = pl.pallas_call(
        functools.partial(_channel_stats_kernel, rows=M, block_rows=block_rows),
        out_shape=(jax.ShapeDtypeStruct((1, C), jnp.float32),) * 2,
        grid=(pl.cdiv(M, block_rows),),
        in_specs=[pl.BlockSpec((block_rows, C), lambda i: (i, 0))],
        out_specs=(pl.BlockSpec((1, C), lambda i: (0, 0)),) * 2,
        compiler_params=pltpu.CompilerParams(dimension_semantics=("arbitrary",)),
    )(x2d)
    return s, q


def pallas_scale_shift_leaky(x2d, scale, shift, slope=0.2):
    """Fused BN affine (precomputed scale/shift) + LeakyReLU in one pass."""
    M, C = x2d.shape
    block_rows = _pick_rows(M, 512)
    return pl.pallas_call(
        functools.partial(_scale_shift_act_kernel, slope=slope),
        out_shape=jax.ShapeDtypeStruct((M, C), jnp.float32),
        grid=(pl.cdiv(M, block_rows),),
        in_specs=[pl.BlockSpec((block_rows, C), lambda i: (i, 0)),
                  pl.BlockSpec((1, C), lambda i: (0, 0)),
                  pl.BlockSpec((1, C), lambda i: (0, 0))],
        out_specs=pl.BlockSpec((block_rows, C), lambda i: (i, 0)),
        compiler_params=pltpu.CompilerParams(dimension_semantics=("parallel",)),
    )(x2d, scale.astype(jnp.float32), shift.astype(jnp.float32))


def pallas_lpips_stage_sum(fx2d, fy2d, lin):
    """Sum over (pixels, channels) of lin[c] * (norm(fx) - norm(fy))^2."""
    M, C = fx2d.shape
    block_rows = _pick_rows(M, 512)
    lin2 = jnp.reshape(lin, (1, C)).astype(jnp.float32)
    out = pl.pallas_call(
        functools.partial(_lpips_stage_kernel, rows=M, block_rows=block_rows),
        out_shape=jax.ShapeDtypeStruct((1, 1), jnp.float32),
        grid=(pl.cdiv(M, block_rows),),
        in_specs=[pl.BlockSpec((block_rows, C), lambda i: (i, 0)),
                  pl.BlockSpec((block_rows, C), lambda i: (i, 0)),
                  pl.BlockSpec((1, C), lambda i: (0, 0))],
        out_specs=pl.BlockSpec((1, 1), lambda i: (0, 0)),
        compiler_params=pltpu.CompilerParams(dimension_semantics=("arbitrary",)),
    )(fx2d.astype(jnp.float32), fy2d.astype(jnp.float32), lin2)
    return out[0, 0]


# ---------------------------------------------------------------------------
# Convolution via NHWC im2col + Pallas GEMM (PyTorch conv2d semantics)
# ---------------------------------------------------------------------------
def _im2col_nhwc(x, kh, kw, stride, pad):
    # x: (N, H, W, C). Patch columns ordered (kh, kw, cin) to match the weight layout.
    x = jnp.pad(x, ((0, 0), (pad, pad), (pad, pad), (0, 0)))
    N, H, W, C = x.shape
    oh = (H - kh) // stride + 1
    ow = (W - kw) // stride + 1
    cols = []
    for i in range(kh):
        for j in range(kw):
            cols.append(x[:, i:i + stride * oh:stride, j:j + stride * ow:stride, :])
    patches = jnp.concatenate(cols, axis=-1)          # (N, oh, ow, kh*kw*C) lane-dense
    return patches.reshape(N * oh * ow, kh * kw * C), oh, ow


def conv2d_nhwc(x, w2, bias, kh, kw, stride, pad, act="none"):
    """x NHWC, w2 pre-reshaped (kh*kw*cin, cout) bf16. Returns NHWC f32."""
    # TODO(synk): fully fusing im2col into the GEMM (strided manual DMA of input rows)
    # would remove the kh*kw x HBM amplification of the patch matrix; kept as im2col
    # + GEMM here for robustness.
    N = x.shape[0]
    patches, oh, ow = _im2col_nhwc(x.astype(jnp.bfloat16), kh, kw, stride, pad)
    cout = w2.shape[1]
    if cout == 1:
        y = pallas_matvec_bias(patches, w2, bias)
    else:
        y = pallas_matmul_bias_act(patches, w2, bias, act=act)
    return y.reshape(N, oh, ow, cout)


# ---------------------------------------------------------------------------
# NLayerDiscriminator (PatchGAN) — deterministic synthetic weights_init
# ---------------------------------------------------------------------------
def init_disc_params(key, in_ch=3, ndf=64, n_layers=3):
    cfgs = [(in_ch, ndf, 2, False)]
    nf = 1
    for n in range(1, n_layers):
        nf_prev, nf = nf, min(2 ** n, 8)
        cfgs.append((ndf * nf_prev, ndf * nf, 2, True))
    nf_prev, nf = nf, min(2 ** n_layers, 8)
    cfgs.append((ndf * nf_prev, ndf * nf, 1, True))
    cfgs.append((ndf * nf, 1, 1, False))
    params = []
    for cin, cout, stride, bn in cfgs:
        key, k1, k2 = jax.random.split(key, 3)
        w = 0.02 * jax.random.normal(k1, (cout, cin, 4, 4), jnp.float32)
        # pre-reshape to GEMM layout (kh, kw, cin, cout) -> (kh*kw*cin, cout), bf16
        w2 = jnp.transpose(w, (2, 3, 1, 0)).reshape(cin * 16, cout).astype(jnp.bfloat16)
        b = jnp.zeros((cout,), jnp.float32)
        gamma = (1.0 + 0.02 * jax.random.normal(k2, (cout,), jnp.float32)) if bn else None
        beta = jnp.zeros((cout,), jnp.float32) if bn else None
        params.append(dict(w2=w2, b=b, kh=4, kw=4, stride=stride, bn=bn,
                           gamma=gamma, beta=beta))
    return params


def discriminator_forward(params, x, stat_groups=1):
    """x: NHWC (stat_groups * Nb, H, W, C). BatchNorm2d train-mode batch stats are
    computed per stat-group so batching real+fake preserves PyTorch semantics."""
    h = x
    L = len(params)
    for li, p in enumerate(params):
        is_last = (li == L - 1)
        act = "none" if (p["bn"] or is_last) else "leaky"   # leaky fused in GEMM
        h = conv2d_nhwc(h, p["w2"], p["b"], p["kh"], p["kw"], p["stride"], 1, act=act)
        if p["bn"]:
            B, oh, ow, C = h.shape
            per = B // stat_groups
            outs = []
            for g in range(stat_groups):
                hg = h[g * per:(g + 1) * per].reshape(per * oh * ow, C)
                s, q = pallas_channel_sum_sumsq(hg)
                m = per * oh * ow
                mean = s / m
                var = jnp.maximum(q / m - mean * mean, 0.0)     # biased (BN train mode)
                scale = p["gamma"].reshape(1, C) / jnp.sqrt(var + 1e-5)
                shift = p["beta"].reshape(1, C) - mean * scale
                yg = pallas_scale_shift_leaky(hg, scale, shift, 0.2)
                outs.append(yg.reshape(per, oh, ow, C))
            h = outs[0] if stat_groups == 1 else jnp.concatenate(outs, axis=0)
    return h   # (B, oh, ow, 1) logits


# ---------------------------------------------------------------------------
# Perceptual (LPIPS-style) loss with deterministic synthetic feature stack
# ---------------------------------------------------------------------------
_LPIPS_SHIFT = jnp.array([-0.030, -0.088, -0.188], jnp.float32)
_LPIPS_SCALE = jnp.array([0.458, 0.448, 0.450], jnp.float32)


def init_lpips_params(key):
    params = []
    for cin, cout in [(3, 16), (16, 32), (32, 64)]:
        key, k1, k2 = jax.random.split(key, 3)
        w = 0.1 * jax.random.normal(k1, (cout, cin, 3, 3), jnp.float32)
        w2 = jnp.transpose(w, (2, 3, 1, 0)).reshape(cin * 9, cout).astype(jnp.bfloat16)
        b = jnp.zeros((cout,), jnp.float32)
        lin = jnp.abs(0.1 * jax.random.normal(k2, (cout,), jnp.float32))
        params.append(dict(w2=w2, b=b, lin=lin))
    return params


def lpips_mean(params, x, y):
    # TODO(synk): real LPIPS uses frozen pretrained VGG16 features; a deterministic
    # 3-stage conv stack stands in, keeping the scale/normalize/sq-diff/1x1-lin/
    # spatial-mean structure. Only mean-over-batch of p_loss is needed downstream.
    N = x.shape[0]

    def scale(t):
        return (t - _LPIPS_SHIFT.reshape(1, 1, 1, 3)) / _LPIPS_SCALE.reshape(1, 1, 1, 3)

    f = jnp.concatenate([scale(x), scale(y)], axis=0)    # batch x and x_rec together
    total = jnp.float32(0.0)
    for p in params:
        f = conv2d_nhwc(f, p["w2"], p["b"], 3, 3, 2, 1, act="relu")  # ReLU fused in GEMM
        B2, h, w, C = f.shape
        fx = f[:N].reshape(N * h * w, C)
        fy = f[N:].reshape(N * h * w, C)
        total = total + pallas_lpips_stage_sum(fx, fy, p["lin"]) / (N * h * w)
    return total


# ---------------------------------------------------------------------------
# VQLPIPSWithDiscriminator forward
# ---------------------------------------------------------------------------
def vqlpips_forward(disc_params, lpips_params, coding_ratio, codebook_loss,
                    inputs, reconstructions, optimizer_idx, global_step,
                    target_coding_ratio=0.5, target_coding_var=0.01,
                    coding_loss_type="kl", coding_loss_weight=1.0,
                    codebook_weight=1.0, perceptual_weight=1.0,
                    disc_factor=1.0, disc_start=0, disc_weight=1.0,
                    disc_weight_max=None, split="train"):
    # single NCHW -> NHWC conversion at the API boundary
    x = jnp.transpose(inputs, (0, 2, 3, 1))
    xrec = jnp.transpose(reconstructions, (0, 2, 3, 1))

    # ---- coding-ratio loss (mean / unbiased var as in torch .mean()/.var()) ----
    mu, var = pallas_mean_var(coding_ratio)
    var = jnp.maximum(var, 1e-12)               # guard log/sqrt
    t_mu = jnp.float32(target_coding_ratio)
    if coding_loss_type == "mse":
        coding_ratio_loss = (mu - t_mu) ** 2
    elif coding_loss_type == "kl":
        logvar = jnp.log(var)
        t_logvar = jnp.log(jnp.float32(target_coding_var))
        kld_elem = (1.0 - t_logvar + logvar
                    - (jnp.exp(logvar) + (mu - t_mu) ** 2) / jnp.exp(t_logvar))
        coding_ratio_loss = -0.5 * kld_elem
    elif coding_loss_type == "wasserstein":
        t_std = jnp.float32(target_coding_var) ** 0.5
        coding_ratio_loss = (mu - t_mu) ** 2 + (jnp.sqrt(var) - t_std) ** 2
    elif coding_loss_type == "wasserstein-var":
        t_std = jnp.float32(target_coding_var) ** 0.5
        coding_ratio_loss = (jnp.sqrt(var) - t_std) ** 2
    else:
        raise NotImplementedError(coding_loss_type)

    # ---- reconstruction + perceptual loss ----
    rec_l1_mean = pallas_absdiff_mean(x, xrec)
    if perceptual_weight > 0:
        p_mean = lpips_mean(lpips_params, x, xrec)
    else:
        p_mean = jnp.float32(0.0)
    # mean(|x - xrec| + pw * p_loss broadcast over (N,C,H,W)):
    rec_loss_mean = rec_l1_mean + perceptual_weight * p_mean
    nll_loss = rec_loss_mean

    disc_f = disc_factor if global_step >= disc_start else 0.0

    if optimizer_idx == 0:
        logits_fake = discriminator_forward(disc_params, xrec)
        g_loss = -jnp.mean(logits_fake)          # tiny logits slab: jnp reduction
        # TODO(synk): calculate_adaptive_weight needs autograd grads wrt the generator
        # last layer; use the eval-time RuntimeError fallback d_weight = 0.0.
        d_weight = jnp.float32(0.0)
        if disc_weight_max is not None:
            d_weight = jnp.minimum(d_weight, disc_weight_max)
        cb_mean = jnp.mean(codebook_loss)        # N-element mean: jnp
        loss = (nll_loss + d_weight * disc_f * g_loss
                + codebook_weight * cb_mean + coding_loss_weight * coding_ratio_loss)
        log = {
            f"{split}_total_loss": jnp.asarray(loss, jnp.float32),
            f"{split}_coding_loss": jnp.asarray(coding_ratio_loss, jnp.float32),
            f"{split}_quant_loss": jnp.asarray(cb_mean, jnp.float32),
            f"{split}_nll_loss": jnp.asarray(nll_loss, jnp.float32),
            f"{split}_rec_loss": jnp.asarray(rec_loss_mean, jnp.float32),
            f"{split}_p_loss": jnp.asarray(p_mean, jnp.float32),
            f"{split}_d_weight": jnp.asarray(d_weight, jnp.float32),
            f"{split}_disc_factor": jnp.asarray(disc_f, jnp.float32),
            f"{split}_g_loss": jnp.asarray(g_loss, jnp.float32),
        }
        return loss, log

    if optimizer_idx == 1:
        n = x.shape[0]
        both = jnp.concatenate([x, xrec], axis=0)               # batch real + fake
        logits = discriminator_forward(disc_params, both, stat_groups=2)
        logits_real, logits_fake = logits[:n], logits[n:]
        # TODO(synk): only the default 'hinge' disc loss is implemented (not 'vanilla').
        d_loss_raw, mean_real, mean_fake = pallas_hinge_and_means(logits_real, logits_fake)
        d_loss = disc_f * d_loss_raw
        log = {
            f"{split}_disc_loss": jnp.asarray(d_loss, jnp.float32),
            f"{split}_logits_real": jnp.asarray(mean_real, jnp.float32),
            f"{split}_logits_fake": jnp.asarray(mean_fake, jnp.float32),
        }
        return d_loss, log

    raise ValueError(f"invalid optimizer_idx: {optimizer_idx}")


# ---------------------------------------------------------------------------
if __name__ == "__main__":
    key = jax.random.PRNGKey(0)
    k1, k2, k3, k4, k5, k6 = jax.random.split(key, 6)

    N, C, H, W = 2, 3, 32, 32                    # disc_in_channels=3; 32x32 spatial
    inputs = jax.random.uniform(k1, (N, C, H, W), jnp.float32, -1.0, 1.0)
    reconstructions = inputs + 0.1 * jax.random.normal(k2, (N, C, H, W), jnp.float32)
    coding_ratio = jax.nn.sigmoid(jax.random.normal(k3, (N, 8, 8), jnp.float32))
    codebook_loss = 0.1 * jnp.abs(jax.random.normal(k4, (N,), jnp.float32))

    disc_params = init_disc_params(k5, in_ch=C, ndf=64, n_layers=3)
    lpips_params = init_lpips_params(k6)

    loss0, log0 = vqlpips_forward(disc_params, lpips_params, coding_ratio,
                                  codebook_loss, inputs, reconstructions,
                                  optimizer_idx=0, global_step=1)
    loss1, log1 = vqlpips_forward(disc_params, lpips_params, coding_ratio,
                                  codebook_loss, inputs, reconstructions,
                                  optimizer_idx=1, global_step=1)
    jax.block_until_ready((loss0, log0, loss1, log1))
    print("KERNEL_OK")
</pallas_src>

<mosaic_0001>
module attributes {stable_mosaic.version = 11 : i64} {
  func.func @_mean_var_kernel(%arg0: i32, %arg1: memref<8x128xf32, #tpu.memory_space<vmem>>, %arg2: memref<1x1xf32, #tpu.memory_space<vmem>>, %arg3: memref<1x1xf32, #tpu.memory_space<vmem>>) attributes {dimension_semantics = [#tpu.dimension_semantics<arbitrary>], iteration_bounds = array<i64: 1>, scalar_prefetch = 0 : i64, scratch_operands = 0 : i64, tpu.core_type = #tpu.core_type<tc>, window_params = [{pipeline_mode = #tpu.pipeline_mode<synchronous>, transform_indices = @transform_0, window_bounds = array<i64: 8, 128>}, {pipeline_mode = #tpu.pipeline_mode<synchronous>, transform_indices = @transform_1, window_bounds = array<i64: 1, 1>}, {pipeline_mode = #tpu.pipeline_mode<synchronous>, transform_indices = @transform_2, window_bounds = array<i64: 1, 1>}]} {
    %c0 = arith.constant 0 : index
    %c0_0 = arith.constant 0 : index
    %0 = vector.load %arg1[%c0, %c0_0] : memref<8x128xf32, #tpu.memory_space<vmem>>, vector<8x128xf32>
    %1 = tpu.iota {dimensions = array<i32: 0>} : vector<8x128xi32>
    %c128_i32 = arith.constant 128 : i32
    %2 = vector.broadcast %c128_i32 : i32 to vector<8x128xi32>
    %3 = arith.muli %1, %2 : vector<8x128xi32>
    %4 = tpu.iota {dimensions = array<i32: 1>} : vector<8x128xi32>
    %5 = arith.addi %3, %4 : vector<8x128xi32>
    %c128_i32_1 = arith.constant 128 : i32
    %6 = vector.broadcast %c128_i32_1 : i32 to vector<8x128xi32>
    %7 = arith.cmpi slt, %5, %6 : vector<8x128xi32>
    %cst = arith.constant 0.000000e+00 : f32
    %8 = vector.broadcast %cst : f32 to vector<8x128xf32>
    %9 = arith.select %7, %0, %8 : vector<8x128xi1>, vector<8x128xf32>
    %10 = vector.shape_cast %9 : vector<8x128xf32> to vector<1x8x128xf32>
    %cst_2 = arith.constant dense<0.000000e+00> : vector<1xf32>
    %11 = vector.multi_reduction <add>, %10, %cst_2 [1, 2] : vector<1x8x128xf32> to vector<1xf32>
    %12 = vector.shape_cast %11 : vector<1xf32> to vector<1x1x1xf32>
    %13 = vector.extract %12[0, 0, 0] : f32 from vector<1x1x1xf32>
    %cst_3 = arith.constant 1.280000e+02 : f32
    %14 = arith.divf %13, %cst_3 : f32
    %15 = vector.broadcast %14 : f32 to vector<8x128xf32>
    %16 = arith.subf %0, %15 : vector<8x128xf32>
    %cst_4 = arith.constant 0.000000e+00 : f32
    %17 = vector.broadcast %cst_4 : f32 to vector<8x128xf32>
    %18 = arith.select %7, %16, %17 : vector<8x128xi1>, vector<8x128xf32>
    %19 = vector.broadcast %14 : f32 to vector<1x1xf32>
    %c0_5 = arith.constant 0 : index
    %c0_6 = arith.constant 0 : index
    %20 = vector.load %arg2[%c0_5, %c0_6] : memref<1x1xf32, #tpu.memory_space<vmem>>, vector<1x1xf32>
    tpu.vector_store %arg2[%c0_5, %c0_6], %19 {strides = array<i32>} : memref<1x1xf32, #tpu.memory_space<vmem>>, vector<1x1xf32>,
    %21 = arith.mulf %18, %18 : vector<8x128xf32>
    %22 = vector.shape_cast %21 : vector<8x128xf32> to vector<1x8x128xf32>
    %cst_7 = arith.constant dense<0.000000e+00> : vector<1xf32>
    %23 = vector.multi_reduction <add>, %22, %cst_7 [1, 2] : vector<1x8x128xf32> to vector<1xf32>
    %24 = vector.shape_cast %23 : vector<1xf32> to vector<1x1x1xf32>
    %25 = vector.extract %24[0, 0, 0] : f32 from vector<1x1x1xf32>
    %cst_8 = arith.constant 1.270000e+02 : f32
    %26 = arith.divf %25, %cst_8 : f32
    %27 = vector.broadcast %26 : f32 to vector<1x1xf32>
    %c0_9 = arith.constant 0 : index
    %c0_10 = arith.constant 0 : index
    %28 = vector.load %arg3[%c0_9, %c0_10] : memref<1x1xf32, #tpu.memory_space<vmem>>, vector<1x1xf32>
    tpu.vector_store %arg3[%c0_9, %c0_10], %27 {strides = array<i32>} : memref<1x1xf32, #tpu.memory_space<vmem>>, vector<1x1xf32>,
    return
  }
  func.func @transform_0(%arg0: i32) -> (i32, i32) {
    %c0_i32 = arith.constant 0 : i32
    %c0_i32_0 = arith.constant 0 : i32
    %c0_i32_1 = arith.constant 0 : i32
    return %c0_i32, %c0_i32_0 : i32, i32
  }
  func.func @transform_1(%arg0: i32) -> (i32, i32) {
    %c0_i32 = arith.constant 0 : i32
    %c0_i32_0 = arith.constant 0 : i32
    %c0_i32_1 = arith.constant 0 : i32
    return %c0_i32, %c0_i32_0 : i32, i32
  }
  func.func @transform_2(%arg0: i32) -> (i32, i32) {
    %c0_i32 = arith.constant 0 : i32
    %c0_i32_0 = arith.constant 0 : i32
    %c0_i32_1 = arith.constant 0 : i32
    return %c0_i32, %c0_i32_0 : i32, i32
  }
}

</mosaic_0001>

<llo_original>
// kernel: tpu_custom_call.1
$region0: #{tpu_custom_call.1}
  #allocation0 [shape = 'u32[]', space=smem, size = 0x4, offset = 0x4, fixed_abs, tag = 'smem constant byte address 0x4 - core index']
  #allocation1 [shape = 'u32[144,128]{1,0:T(1,128)}', space=vmem, size = 0x12000, scoped, tag = 'internal scratch']
  %s0 = inlined_call_operand.hbm [shape: f32[8,128], index: 0, kind: input, shape index: {}]
  %s1 = inlined_call_operand.hbm [shape: f32[1,1], index: 1, kind: output, shape index: {0}]
  %s2 = inlined_call_operand.hbm [shape: f32[1,1], index: 2, kind: output, shape index: {1}]
  %3 = xla_tuple %s1, %s2
  %s4 = sld [smem:[#allocation0]]
  $region26: #{tpu_custom_call.1} parent=0
    _
  %s6 = ssub.s32 1, %s4
  %s7 = scalar_select 0, %s6, %s4
  $region1: #{tpu_custom_call.1} parent=0
    #allocation2 [shape = 'u8[4096]{0}', space=vmem, size = 0x1000, scoped, tag = 'input window, operand 0, single buffered']
    #allocation3 [shape = 's32[1]{0}', space=sflag, size = 0x4, scoped, tag = 'scoped memory for tpu_custom_call.1']
    #allocation4 [shape = 's32[1]{0}', space=sflag, size = 0x4, scoped, tag = 'scoped memory for tpu_custom_call.1']
    #allocation5 [shape = 'u8[512]{0}', space=vmem, size = 0x400, scoped, tag = 'output window, operand 0, single buffered']
    #allocation6 [shape = 'u8[512]{0}', space=vmem, size = 0x400, scoped, tag = 'output window, operand 1, single buffered']
    #allocation7 [shape = 's32[1]{0}', space=sflag, size = 0x4, scoped, tag = 'scoped memory for tpu_custom_call.1']
    %8 = vsyncpa [#allocation3], 0
    %9 = vsyncpa [#allocation4], 0
    %10 = vsyncpa [#allocation7], 0
    // Predicated region
    $region2: #{tpu_custom_call.1} parent=1 // pred_check
      _
    $region3: #{tpu_custom_call.1} parent=1 // pred_check_branch
      %12 = sbr.rel (0) target = $region5
    $region4: #{tpu_custom_call.1} parent=1 // pred_region
      %s14 = ssub.s32 128, 128
      %15 = vsyncadd [#allocation3], %s14
      %s17 = sshll.u32 [#allocation2], 4
      %s18 = int_to_ptr.vmem [resolvable:$true] %s17
      %20 = dma.hbm_to_vmem [thread:$0]  %s0, 128, %s18, [#allocation3]
    $region5: #{tpu_custom_call.1} parent=1 // pred_fallthru
      _
    // Predicated region
    $region6: #{tpu_custom_call.1} parent=1 // pred_check
      _
    $region7: #{tpu_custom_call.1} parent=1 // pred_check_branch
      %22 = sbr.rel (0) target = $region9
    $region8: #{tpu_custom_call.1} parent=1 // pred_region
      %23 = dma.done [#allocation3], 128
    $region9: #{tpu_custom_call.1} parent=1 // pred_fallthru
      _
    %v24 = vld [vmem:[#allocation2] sm:$0xff]
    %v25 = vlaneseq
    %v26 = vshrl.u32 %v25, 7
    %v27 = vmul.u32 %v26, 128
    %v28 = vlaneseq
    %v29 = vand.u32 %v28, 127
    %v30 = vadd.s32 %v27, %v29
    %vm31 = vcmp.lt.s32.totalorder %v30, 128
    %v32 = vsel %vm31, %v24, 0.0
    %33 = vadd.xlane.f32.xlu0 %v32
    %v34 = vpop.xlane.xlu0 %33
    %v35 = vrot.slane %v34, 4
    %v36 = vadd.f32 %v34, %v35
    %v37 = vrot.slane %v36, 2
    %v38 = vadd.f32 %v36, %v37
    %v39 = vrot.slane %v38, 1
    %v40 = vadd.f32 %v38, %v39
    %s41 = vtos %v40
    %v42 = vrcp.pop 128.0
    %s43 = vtos %v42
    %s44 = smul.f32 %s41, %s43
    %v45 = vstv %s44
    %v46 = vsub.f32 %v24, %v45
    %v47 = vsel %vm31, %v46, 0.0
    %vm48 = vcmask 0
    %49 = vst.msk [vmem:[#allocation5] sm:$0x1] %vm48, %v45
    %v50 = vmul.f32 %v47, %v47
    %51 = vadd.xlane.f32.xlu0 %v50
    %v52 = vpop.xlane.xlu0 %51
    %v53 = vrot.slane %v52, 4
    %v54 = vadd.f32 %v52, %v53
    %v55 = vrot.slane %v54, 2
    %v56 = vadd.f32 %v54, %v55
    %v57 = vrot.slane %v56, 1
    %v58 = vadd.f32 %v56, %v57
    %s59 = vtos %v58
    %v60 = vrcp.pop 127.0
    %s61 = vtos %v60
    %s62 = smul.f32 %s59, %s61
    %v63 = vstv %s62
    %64 = vst.msk [vmem:[#allocation6] sm:$0x1] %vm48, %v63
    // Predicated region
    $region10: #{tpu_custom_call.1} parent=1 // pred_check
      _
    $region11: #{tpu_custom_call.1} parent=1 // pred_check_branch
      %66 = sbr.rel (0) target = $region13
    $region12: #{tpu_custom_call.1} parent=1 // pred_region
      %s68 = ssub.s32 16, 16
      %69 = vsyncadd [#allocation4], %s68
      %s71 = sshll.u32 [#allocation5], 4
      %s72 = int_to_ptr.vmem [resolvable:$true] %s71
      %74 = dma.vmem_to_hbm [thread:$0]  %s72, 16, %s1, [#allocation4]
    $region13: #{tpu_custom_call.1} parent=1 // pred_fallthru
      _
    // Predicated region
    $region14: #{tpu_custom_call.1} parent=1 // pred_check
      _
    $region15: #{tpu_custom_call.1} parent=1 // pred_check_branch
      %76 = sbr.rel (0) target = $region17
    $region16: #{tpu_custom_call.1} parent=1 // pred_region
      %s78 = ssub.s32 16, 16
      %79 = vsyncadd [#allocation7], %s78
      %s81 = sshll.u32 [#allocation6], 4
      %s82 = int_to_ptr.vmem [resolvable:$true] %s81
      %84 = dma.vmem_to_hbm [thread:$0]  %s82, 16, %s2, [#allocation7]
    $region17: #{tpu_custom_call.1} parent=1 // pred_fallthru
      _
    // Predicated region
    $region18: #{tpu_custom_call.1} parent=1 // pred_check
      _
    $region19: #{tpu_custom_call.1} parent=1 // pred_check_branch
      %86 = sbr.rel (0) target = $region21
    $region20: #{tpu_custom_call.1} parent=1 // pred_region
      %87 = dma.done [#allocation4], 16
    $region21: #{tpu_custom_call.1} parent=1 // pred_fallthru
      _
    // Predicated region
    $region22: #{tpu_custom_call.1} parent=1 // pred_check
      _
    $region23: #{tpu_custom_call.1} parent=1 // pred_check_branch
      %89 = sbr.rel (0) target = $region25
    $region24: #{tpu_custom_call.1} parent=1 // pred_region
      %90 = dma.done [#allocation7], 16
    $region25: #{tpu_custom_call.1} parent=1 // pred_fallthru
      _
    %91 = vsyncpa [#allocation3], 1
    %92 = vsyncpa [#allocation4], 1
    %93 = vsyncpa [#allocation7], 1

</llo_original>
